<compile_context>
chip_gen: v7x
topology: tpu7x:2x2x1
jax: 0.10.0
libtpu: 0.0.40
codegen_flags: <defaults>
</compile_context>

<pallas_src>
import functools
import math

import jax
import jax.numpy as jnp
from jax import lax
from jax.experimental import pallas as pl
from jax.experimental.pallas import tpu as pltpu


def _round_up(x, m):
    return (x + m - 1) // m * m


# ---------------------------------------------------------------------------
# Kernel 1: serial RNN recurrence  h = tanh(g_t + h @ W_hh)
# grid = (batch_chunks [parallel], time_chunks [arbitrary])
# ---------------------------------------------------------------------------
def _rnn_recurrence_kernel(g_ref, h0_ref, whh_ref, h_out_ref, h_scr,
                           *, time_chunk, seq_len, needs_mask, unroll):
    ti = pl.program_id(1)

    @pl.when(ti == 0)
    def _init():
        h_scr[...] = h0_ref[...]

    whh = whh_ref[...]                      # (Hp, Hp), resident across grid
    t_base = ti * time_chunk

    def step(i, h):
        g_i = g_ref[i]                      # (Bc, Hp) -- projected input + bias
        h_new = jnp.tanh(
            g_i + jnp.dot(h, whh, preferred_element_type=jnp.float32))
        if needs_mask:                      # skip zero-padded tail timesteps
            h_new = jnp.where(t_base + i < seq_len, h_new, h)
        return h_new

    h_fin = lax.fori_loop(0, time_chunk, step, h_scr[...], unroll=unroll)
    h_scr[...] = h_fin

    @pl.when(ti == pl.num_programs(1) - 1)
    def _done():
        h_out_ref[...] = h_fin.astype(h_out_ref.dtype)


# ---------------------------------------------------------------------------
# Kernel 2: translation score epilogue.
#   score = -|h - i|^2 = 2*h.i - |h|^2 - |i|^2   (cross term on the MXU)
# grid = (batch rows [parallel], P tiles [parallel])
# ---------------------------------------------------------------------------
def _score_kernel(h_ref, ip_ref, s_ref):
    # h_ref: (1, 1, Hp), ip_ref: (1, Pt, Hp), s_ref: (1, 1, Pt)
    h = h_ref[0]                                            # (1, Hp)
    ip2 = ip_ref[0]                                         # (Pt, Hp)
    ip3 = ip_ref[...]                                       # (1, Pt, Hp)
    cross = lax.dot_general(h, ip2, (((1,), (1,)), ((), ())),
                            preferred_element_type=jnp.float32)   # (1, Pt)
    h_sq = jnp.sum(h * h, axis=-1, keepdims=True)                 # (1, 1)
    ip_sq = jnp.sum(ip3 * ip3, axis=-1)                           # (1, Pt)
    s_ref[0] = (2.0 * cross - h_sq - ip_sq).astype(s_ref.dtype)


# ---------------------------------------------------------------------------
# Wrapper
# ---------------------------------------------------------------------------
def rtn_forward(users_items, pred_items, emb_table, w_ih, w_hh, b, hidden=None):
    """Pallas implementation of UserShortTermPreferenceModeling.forward."""
    B, T = users_items.shape
    _, P = pred_items.shape
    H = emb_table.shape[1]
    f32 = jnp.float32

    # ---- vreg/MXU friendly padded sizes ----------------------------------
    Hp = _round_up(H, 128)            # lane dim
    Bp = _round_up(B, 8)              # sublane dim
    Pp = _round_up(P, 128)
    if Pp > 512:                      # tile the candidate axis for large P
        Pp = _round_up(Pp, 512)
        Pt = 512
    else:
        Pt = Pp
    n_pt = Pp // Pt

    # batch chunks: leading "parallel" grid axis (lets v7x split over 2 TCs)
    n_bc = 2 if (Bp % 16 == 0) else 1
    Bc = Bp // n_bc

    # time chunk sized so one G block is a few MiB: amortises per-grid-step
    # overhead and overlaps the next chunk's DMA with Tc steps of compute.
    Tc = int(max(1, min(T, (6 * 1024 * 1024) // (Bc * Hp * 4))))
    n_tc = -(-T // Tc)
    Tp = n_tc * Tc

    # ---- JAX glue: gathers, padding, hoisted input projection -------------
    emb_p = jnp.pad(emb_table.astype(f32), ((0, 0), (0, Hp - H)))
    w_ih_p = jnp.pad(w_ih.astype(f32), ((0, Hp - H), (0, Hp - H)))
    w_hh_p = jnp.pad(w_hh.astype(f32), ((0, Hp - H), (0, Hp - H)))
    b_p = jnp.pad(b.astype(f32), (0, Hp - H))

    # history gathered directly in (T, B, Hp): no extra HBM transpose pass
    i_hist = jnp.take(emb_p, users_items.T, axis=0)           # (T, B, Hp)
    i_pred = jnp.take(emb_p, pred_items, axis=0)              # (B, P, Hp)

    # hoisted input projection: one large matmul for all timesteps (+ bias)
    g = jnp.dot(i_hist.reshape(T * B, Hp), w_ih_p,
                precision=lax.Precision.HIGHEST) + b_p[None, :]
    g = g.reshape(T, B, Hp)
    g = jnp.pad(g, ((0, Tp - T), (0, Bp - B), (0, 0)))        # (Tp, Bp, Hp)

    if hidden is None:
        h0 = jnp.zeros((Bp, Hp), f32)                          # init_hidden
    else:
        h0 = jnp.pad(hidden.astype(f32), ((0, Bp - B), (0, Hp - H)))

    rnn_kernel = functools.partial(
        _rnn_recurrence_kernel,
        time_chunk=Tc, seq_len=T, needs_mask=(Tp != T), unroll=bool(Tc <= 32))

    h_out = pl.pallas_call(
        rnn_kernel,
        out_shape=jax.ShapeDtypeStruct((Bp, Hp), f32),
        grid_spec=pltpu.PrefetchScalarGridSpec(
            num_scalar_prefetch=0,
            grid=(n_bc, n_tc),
            in_specs=[
                pl.BlockSpec((Tc, Bc, Hp), lambda bi, ti: (ti, bi, 0)),   # G
                pl.BlockSpec((Bc, Hp), lambda bi, ti: (bi, 0)),           # h0
                pl.BlockSpec((Hp, Hp), lambda bi, ti: (0, 0)),            # W_hh
            ],
            out_specs=pl.BlockSpec((Bc, Hp), lambda bi, ti: (bi, 0)),
            scratch_shapes=[pltpu.VMEM((Bc, Hp), jnp.float32)],
        ),
        compiler_params=pltpu.CompilerParams(
            dimension_semantics=("parallel", "arbitrary")),
    )(g, h0, w_hh_p)

    # ---- scoring epilogue (separate call: i_pred never resident during RNN) --
    i_pred_p = jnp.pad(i_pred, ((0, Bp - B), (0, Pp - P), (0, 0)))
    h_3d = h_out.reshape(Bp, 1, Hp)

    scores_p = pl.pallas_call(
        _score_kernel,
        out_shape=jax.ShapeDtypeStruct((Bp, 1, Pp), f32),
        grid_spec=pltpu.PrefetchScalarGridSpec(
            num_scalar_prefetch=0,
            grid=(Bp, n_pt),
            in_specs=[
                pl.BlockSpec((1, 1, Hp), lambda bi, pi: (bi, 0, 0)),
                pl.BlockSpec((1, Pt, Hp), lambda bi, pi: (bi, pi, 0)),
            ],
            out_specs=pl.BlockSpec((1, 1, Pt), lambda bi, pi: (bi, 0, pi)),
        ),
        compiler_params=pltpu.CompilerParams(
            dimension_semantics=("parallel", "parallel")),
    )(h_3d, i_pred_p)

    scores = scores_p.reshape(Bp, Pp)[:B, :P]
    return scores, h_out[:B, :H]


# ---------------------------------------------------------------------------
# Pure-JAX reference (semantic ground truth).
# ---------------------------------------------------------------------------
def rtn_forward_ref(users_items, pred_items, emb_table, w_ih, w_hh, b, hidden=None):
    B, T = users_items.shape
    H = emb_table.shape[1]
    i_hist = jnp.take(emb_table, users_items, axis=0)
    i_pred = jnp.take(emb_table, pred_items, axis=0)
    h = jnp.zeros((B, H), jnp.float32) if hidden is None else hidden
    for t in range(T):
        h = jnp.tanh(
            jnp.dot(i_hist[:, t, :], w_ih, precision=lax.Precision.HIGHEST)
            + jnp.dot(h, w_hh, precision=lax.Precision.HIGHEST) + b)
    u = h[:, None, :]
    score = -((jnp.abs(u - i_pred)) ** 2).sum(axis=-1)
    return score, h


if __name__ == "__main__":
    n_items, n_hidden = 20, 32
    B, T, P = 2, 8, 16

    key = jax.random.PRNGKey(0)
    k_emb, k_wih, k_whh, k_b, k_u, k_p = jax.random.split(key, 6)

    # ModEmbedding init: normal(0, sqrt(0.1 / n_hidden)), padding_idx=0 zeroed.
    std = math.sqrt(0.1 / n_hidden)
    emb_table = std * jax.random.normal(k_emb, (n_items, n_hidden), jnp.float32)
    emb_table = emb_table.at[0].set(0.0)

    # RNN params (Elman cell), uniform(-1/sqrt(H), 1/sqrt(H)) like nn.RNN defaults.
    bound = 1.0 / math.sqrt(n_hidden)
    w_ih = jax.random.uniform(k_wih, (n_hidden, n_hidden), jnp.float32, -bound, bound)
    w_hh = jax.random.uniform(k_whh, (n_hidden, n_hidden), jnp.float32, -bound, bound)
    b = jax.random.uniform(k_b, (n_hidden,), jnp.float32, -bound, bound)

    users_items = jax.random.randint(k_u, (B, T), 0, n_items, jnp.int32)
    pred_items = jax.random.randint(k_p, (B, P), 0, n_items, jnp.int32)

    fwd = jax.jit(lambda ui, pi: rtn_forward(ui, pi, emb_table, w_ih, w_hh, b))
    scores, hidden = fwd(users_items, pred_items)
    jax.block_until_ready((scores, hidden))

    scores_ref, hidden_ref = rtn_forward_ref(
        users_items, pred_items, emb_table, w_ih, w_hh, b)

    assert scores.shape == (B, P) and hidden.shape == (B, n_hidden)
    assert jnp.allclose(scores, scores_ref, atol=1e-4, rtol=1e-4), (
        float(jnp.max(jnp.abs(scores - scores_ref))))
    assert jnp.allclose(hidden, hidden_ref, atol=1e-4, rtol=1e-4), (
        float(jnp.max(jnp.abs(hidden - hidden_ref))))

    print("KERNEL_OK")
</pallas_src>

<mosaic_0001>
module attributes {stable_mosaic.version = 11 : i64} {
  func.func @_rnn_recurrence_kernel(%arg0: i32, %arg1: i32, %arg2: memref<8x8x128xf32, #tpu.memory_space<vmem>>, %arg3: memref<8x128xf32, #tpu.memory_space<vmem>>, %arg4: memref<128x128xf32, #tpu.memory_space<vmem>>, %arg5: memref<8x128xf32, #tpu.memory_space<vmem>>, %arg6: memref<8x128xf32, #tpu.memory_space<vmem>>) attributes {dimension_semantics = [#tpu.dimension_semantics<parallel>, #tpu.dimension_semantics<arbitrary>], iteration_bounds = array<i64: 1, 1>, scalar_prefetch = 0 : i64, scratch_operands = 1 : i64, tpu.core_type = #tpu.core_type<tc>, window_params = [{transform_indices = @transform_0, window_bounds = array<i64: 8, 8, 128>}, {transform_indices = @transform_1, window_bounds = array<i64: 8, 128>}, {pipeline_mode = #tpu.pipeline_mode<synchronous>, transform_indices = @transform_2, window_bounds = array<i64: 128, 128>}, {transform_indices = @transform_3, window_bounds = array<i64: 8, 128>}]} {
    %c0_i32 = arith.constant 0 : i32
    %0 = arith.cmpi eq, %arg1, %c0_i32 : i32
    %1 = arith.extui %0 : i1 to i32
    %c0_i32_0 = arith.constant 0 : i32
    %2 = arith.cmpi ne, %1, %c0_i32_0 : i32
    scf.if %2 {
      %c0_32 = arith.constant 0 : index
      %c0_33 = arith.constant 0 : index
      %57 = vector.load %arg3[%c0_32, %c0_33] : memref<8x128xf32, #tpu.memory_space<vmem>>, vector<8x128xf32>
      %c0_34 = arith.constant 0 : index
      %c0_35 = arith.constant 0 : index
      %58 = vector.load %arg6[%c0_34, %c0_35] : memref<8x128xf32, #tpu.memory_space<vmem>>, vector<8x128xf32>
      tpu.vector_store %arg6[%c0_34, %c0_35], %57 {strides = array<i32>} : memref<8x128xf32, #tpu.memory_space<vmem>>, vector<8x128xf32>,
    } else {
    }
    %c0 = arith.constant 0 : index
    %c0_1 = arith.constant 0 : index
    %3 = vector.load %arg4[%c0, %c0_1] : memref<128x128xf32, #tpu.memory_space<vmem>>, vector<128x128xf32>
    %c0_2 = arith.constant 0 : index
    %c0_3 = arith.constant 0 : index
    %4 = vector.load %arg6[%c0_2, %c0_3] : memref<8x128xf32, #tpu.memory_space<vmem>>, vector<8x128xf32>
    %c0_i32_4 = arith.constant 0 : i32
    %5 = arith.index_cast %c0_i32_4 : i32 to index
    %c0_5 = arith.constant 0 : index
    %c0_6 = arith.constant 0 : index
    %6 = vector.load %arg2[%5, %c0_5, %c0_6] : memref<8x8x128xf32, #tpu.memory_space<vmem>>, vector<1x8x128xf32>
    %7 = vector.shape_cast %6 : vector<1x8x128xf32> to vector<8x128xf32>
    %cst = arith.constant dense<0.000000e+00> : vector<8x128xf32>
    %8 = tpu.matmul %4, %3, %cst {dimension_numbers = #tpu.dot_dimension_numbers<[1], [0], [0], [1], [0, 0, 1, 1], [], []>} : vector<8x128xf32>, vector<128x128xf32>, vector<8x128xf32> -> vector<8x128xf32>
    %9 = arith.addf %7, %8 : vector<8x128xf32>
    %10 = math.tanh %9 : vector<8x128xf32>
    %c1_i32 = arith.constant 1 : i32
    %11 = arith.index_cast %c1_i32 : i32 to index
    %c0_7 = arith.constant 0 : index
    %c0_8 = arith.constant 0 : index
    %12 = vector.load %arg2[%11, %c0_7, %c0_8] : memref<8x8x128xf32, #tpu.memory_space<vmem>>, vector<1x8x128xf32>
    %13 = vector.shape_cast %12 : vector<1x8x128xf32> to vector<8x128xf32>
    %cst_9 = arith.constant dense<0.000000e+00> : vector<8x128xf32>
    %14 = tpu.matmul %10, %3, %cst_9 {dimension_numbers = #tpu.dot_dimension_numbers<[1], [0], [0], [1], [0, 0, 1, 1], [], []>} : vector<8x128xf32>, vector<128x128xf32>, vector<8x128xf32> -> vector<8x128xf32>
    %15 = arith.addf %13, %14 : vector<8x128xf32>
    %16 = math.tanh %15 : vector<8x128xf32>
    %c2_i32 = arith.constant 2 : i32
    %17 = arith.index_cast %c2_i32 : i32 to index
    %c0_10 = arith.constant 0 : index
    %c0_11 = arith.constant 0 : index
    %18 = vector.load %arg2[%17, %c0_10, %c0_11] : memref<8x8x128xf32, #tpu.memory_space<vmem>>, vector<1x8x128xf32>
    %19 = vector.shape_cast %18 : vector<1x8x128xf32> to vector<8x128xf32>
    %cst_12 = arith.constant dense<0.000000e+00> : vector<8x128xf32>
    %20 = tpu.matmul %16, %3, %cst_12 {dimension_numbers = #tpu.dot_dimension_numbers<[1], [0], [0], [1], [0, 0, 1, 1], [], []>} : vector<8x128xf32>, vector<128x128xf32>, vector<8x128xf32> -> vector<8x128xf32>
    %21 = arith.addf %19, %20 : vector<8x128xf32>
    %22 = math.tanh %21 : vector<8x128xf32>
    %c3_i32 = arith.constant 3 : i32
    %23 = arith.index_cast %c3_i32 : i32 to index
    %c0_13 = arith.constant 0 : index
    %c0_14 = arith.constant 0 : index
    %24 = vector.load %arg2[%23, %c0_13, %c0_14] : memref<8x8x128xf32, #tpu.memory_space<vmem>>, vector<1x8x128xf32>
    %25 = vector.shape_cast %24 : vector<1x8x128xf32> to vector<8x128xf32>
    %cst_15 = arith.constant dense<0.000000e+00> : vector<8x128xf32>
    %26 = tpu.matmul %22, %3, %cst_15 {dimension_numbers = #tpu.dot_dimension_numbers<[1], [0], [0], [1], [0, 0, 1, 1], [], []>} : vector<8x128xf32>, vector<128x128xf32>, vector<8x128xf32> -> vector<8x128xf32>
    %27 = arith.addf %25, %26 : vector<8x128xf32>
    %28 = math.tanh %27 : vector<8x128xf32>
    %c4_i32 = arith.constant 4 : i32
    %29 = arith.index_cast %c4_i32 : i32 to index
    %c0_16 = arith.constant 0 : index
    %c0_17 = arith.constant 0 : index
    %30 = vector.load %arg2[%29, %c0_16, %c0_17] : memref<8x8x128xf32, #tpu.memory_space<vmem>>, vector<1x8x128xf32>
    %31 = vector.shape_cast %30 : vector<1x8x128xf32> to vector<8x128xf32>
    %cst_18 = arith.constant dense<0.000000e+00> : vector<8x128xf32>
    %32 = tpu.matmul %28, %3, %cst_18 {dimension_numbers = #tpu.dot_dimension_numbers<[1], [0], [0], [1], [0, 0, 1, 1], [], []>} : vector<8x128xf32>, vector<128x128xf32>, vector<8x128xf32> -> vector<8x128xf32>
    %33 = arith.addf %31, %32 : vector<8x128xf32>
    %34 = math.tanh %33 : vector<8x128xf32>
    %c5_i32 = arith.constant 5 : i32
    %35 = arith.index_cast %c5_i32 : i32 to index
    %c0_19 = arith.constant 0 : index
    %c0_20 = arith.constant 0 : index
    %36 = vector.load %arg2[%35, %c0_19, %c0_20] : memref<8x8x128xf32, #tpu.memory_space<vmem>>, vector<1x8x128xf32>
    %37 = vector.shape_cast %36 : vector<1x8x128xf32> to vector<8x128xf32>
    %cst_21 = arith.constant dense<0.000000e+00> : vector<8x128xf32>
    %38 = tpu.matmul %34, %3, %cst_21 {dimension_numbers = #tpu.dot_dimension_numbers<[1], [0], [0], [1], [0, 0, 1, 1], [], []>} : vector<8x128xf32>, vector<128x128xf32>, vector<8x128xf32> -> vector<8x128xf32>
    %39 = arith.addf %37, %38 : vector<8x128xf32>
    %40 = math.tanh %39 : vector<8x128xf32>
    %c6_i32 = arith.constant 6 : i32
    %41 = arith.index_cast %c6_i32 : i32 to index
    %c0_22 = arith.constant 0 : index
    %c0_23 = arith.constant 0 : index
    %42 = vector.load %arg2[%41, %c0_22, %c0_23] : memref<8x8x128xf32, #tpu.memory_space<vmem>>, vector<1x8x128xf32>
    %43 = vector.shape_cast %42 : vector<1x8x128xf32> to vector<8x128xf32>
    %cst_24 = arith.constant dense<0.000000e+00> : vector<8x128xf32>
    %44 = tpu.matmul %40, %3, %cst_24 {dimension_numbers = #tpu.dot_dimension_numbers<[1], [0], [0], [1], [0, 0, 1, 1], [], []>} : vector<8x128xf32>, vector<128x128xf32>, vector<8x128xf32> -> vector<8x128xf32>
    %45 = arith.addf %43, %44 : vector<8x128xf32>
    %46 = math.tanh %45 : vector<8x128xf32>
    %c7_i32 = arith.constant 7 : i32
    %47 = arith.index_cast %c7_i32 : i32 to index
    %c0_25 = arith.constant 0 : index
    %c0_26 = arith.constant 0 : index
    %48 = vector.load %arg2[%47, %c0_25, %c0_26] : memref<8x8x128xf32, #tpu.memory_space<vmem>>, vector<1x8x128xf32>
    %49 = vector.shape_cast %48 : vector<1x8x128xf32> to vector<8x128xf32>
    %cst_27 = arith.constant dense<0.000000e+00> : vector<8x128xf32>
    %50 = tpu.matmul %46, %3, %cst_27 {dimension_numbers = #tpu.dot_dimension_numbers<[1], [0], [0], [1], [0, 0, 1, 1], [], []>} : vector<8x128xf32>, vector<128x128xf32>, vector<8x128xf32> -> vector<8x128xf32>
    %51 = arith.addf %49, %50 : vector<8x128xf32>
    %52 = math.tanh %51 : vector<8x128xf32>
    %c8_i32 = arith.constant 8 : i32
    %c0_28 = arith.constant 0 : index
    %c0_29 = arith.constant 0 : index
    %53 = vector.load %arg6[%c0_28, %c0_29] : memref<8x128xf32, #tpu.memory_space<vmem>>, vector<8x128xf32>
    tpu.vector_store %arg6[%c0_28, %c0_29], %52 {strides = array<i32>} : memref<8x128xf32, #tpu.memory_space<vmem>>, vector<8x128xf32>,
    %c0_i32_30 = arith.constant 0 : i32
    %54 = arith.cmpi eq, %arg1, %c0_i32_30 : i32
    %55 = arith.extui %54 : i1 to i32
    %c0_i32_31 = arith.constant 0 : i32
    %56 = arith.cmpi ne, %55, %c0_i32_31 : i32
    scf.if %56 {
      %c0_32 = arith.constant 0 : index
      %c0_33 = arith.constant 0 : index
      %57 = vector.load %arg5[%c0_32, %c0_33] : memref<8x128xf32, #tpu.memory_space<vmem>>, vector<8x128xf32>
      tpu.vector_store %arg5[%c0_32, %c0_33], %52 {strides = array<i32>} : memref<8x128xf32, #tpu.memory_space<vmem>>, vector<8x128xf32>,
    } else {
    }
    return
  }
  func.func @transform_0(%arg0: i32, %arg1: i32) -> (i32, i32, i32) {
    %c0_i32 = arith.constant 0 : i32
    %c0_i32_0 = arith.constant 0 : i32
    return %arg1, %arg0, %c0_i32 : i32, i32, i32
  }
  func.func @transform_1(%arg0: i32, %arg1: i32) -> (i32, i32) {
    %c0_i32 = arith.constant 0 : i32
    %c0_i32_0 = arith.constant 0 : i32
    return %arg0, %c0_i32 : i32, i32
  }
  func.func @transform_2(%arg0: i32, %arg1: i32) -> (i32, i32) {
    %c0_i32 = arith.constant 0 : i32
    %c0_i32_0 = arith.constant 0 : i32
    %c0_i32_1 = arith.constant 0 : i32
    return %c0_i32, %c0_i32_0 : i32, i32
  }
  func.func @transform_3(%arg0: i32, %arg1: i32) -> (i32, i32) {
    %c0_i32 = arith.constant 0 : i32
    %c0_i32_0 = arith.constant 0 : i32
    return %arg0, %c0_i32 : i32, i32
  }
}

module attributes {stable_mosaic.version = 11 : i64} {
  func.func @_score_kernel(%arg0: i32, %arg1: i32, %arg2: memref<1x1x128xf32, #tpu.memory_space<vmem>>, %arg3: memref<1x128x128xf32, #tpu.memory_space<vmem>>, %arg4: memref<1x1x128xf32, #tpu.memory_space<vmem>>) attributes {dimension_semantics = [#tpu.dimension_semantics<parallel>, #tpu.dimension_semantics<parallel>], iteration_bounds = array<i64: 8, 1>, scalar_prefetch = 0 : i64, scratch_operands = 0 : i64, tpu.core_type = #tpu.core_type<tc>, window_params = [{transform_indices = @transform_0, window_bounds = array<i64: 1, 1, 128>}, {transform_indices = @transform_1, window_bounds = array<i64: 1, 128, 128>}, {transform_indices = @transform_2, window_bounds = array<i64: 1, 1, 128>}]} {
    %c0 = arith.constant 0 : index
    %c0_0 = arith.constant 0 : index
    %c0_1 = arith.constant 0 : index
    %0 = vector.load %arg2[%c0, %c0_0, %c0_1] : memref<1x1x128xf32, #tpu.memory_space<vmem>>, vector<1x1x128xf32>
    %1 = vector.shape_cast %0 : vector<1x1x128xf32> to vector<1x128xf32>
    %c0_2 = arith.constant 0 : index
    %c0_3 = arith.constant 0 : index
    %c0_4 = arith.constant 0 : index
    %2 = vector.load %arg3[%c0_2, %c0_3, %c0_4] : memref<1x128x128xf32, #tpu.memory_space<vmem>>, vector<1x128x128xf32>
    %3 = vector.shape_cast %2 : vector<1x128x128xf32> to vector<128x128xf32>
    %c0_5 = arith.constant 0 : index
    %c0_6 = arith.constant 0 : index
    %c0_7 = arith.constant 0 : index
    %4 = vector.load %arg3[%c0_5, %c0_6, %c0_7] : memref<1x128x128xf32, #tpu.memory_space<vmem>>, vector<1x128x128xf32>
    %cst = arith.constant dense<0.000000e+00> : vector<1x128xf32>
    %5 = tpu.matmul %1, %3, %cst {dimension_numbers = #tpu.dot_dimension_numbers<[1], [1], [0], [0], [0, 0, 1, 0], [], []>} : vector<1x128xf32>, vector<128x128xf32>, vector<1x128xf32> -> vector<1x128xf32>
    %6 = arith.mulf %1, %1 : vector<1x128xf32>
    %cst_8 = arith.constant dense<0.000000e+00> : vector<1xf32>
    %7 = vector.multi_reduction <add>, %6, %cst_8 [1] : vector<1x128xf32> to vector<1xf32>
    %8 = vector.shape_cast %7 : vector<1xf32> to vector<1x1xf32>
    %9 = arith.mulf %4, %4 : vector<1x128x128xf32>
    %cst_9 = arith.constant dense<0.000000e+00> : vector<1x128xf32>
    %10 = vector.multi_reduction <add>, %9, %cst_9 [2] : vector<1x128x128xf32> to vector<1x128xf32>
    %cst_10 = arith.constant 2.000000e+00 : f32
    %11 = vector.broadcast %cst_10 : f32 to vector<1x128xf32>
    %12 = arith.mulf %11, %5 : vector<1x128xf32>
    %13 = vector.broadcast %8 : vector<1x1xf32> to vector<1x128xf32>
    %14 = arith.subf %12, %13 : vector<1x128xf32>
    %15 = arith.subf %14, %10 : vector<1x128xf32>
    %c0_11 = arith.constant 0 : index
    %c0_12 = arith.constant 0 : index
    %c0_13 = arith.constant 0 : index
    %16 = vector.load %arg4[%c0_11, %c0_12, %c0_13] : memref<1x1x128xf32, #tpu.memory_space<vmem>>, vector<1x1x128xf32>
    %17 = vector.shape_cast %16 : vector<1x1x128xf32> to vector<1x128xf32>
    %18 = vector.shape_cast %15 : vector<1x128xf32> to vector<1x1x128xf32>
    tpu.vector_store %arg4[%c0_11, %c0_12, %c0_13], %18 {strides = array<i32>} : memref<1x1x128xf32, #tpu.memory_space<vmem>>, vector<1x1x128xf32>,
    return
  }
  func.func @transform_0(%arg0: i32, %arg1: i32) -> (i32, i32, i32) {
    %c0_i32 = arith.constant 0 : i32
    %c0_i32_0 = arith.constant 0 : i32
    %c0_i32_1 = arith.constant 0 : i32
    return %arg0, %c0_i32, %c0_i32_0 : i32, i32, i32
  }
  func.func @transform_1(%arg0: i32, %arg1: i32) -> (i32, i32, i32) {
    %c0_i32 = arith.constant 0 : i32
    %c0_i32_0 = arith.constant 0 : i32
    return %arg0, %arg1, %c0_i32 : i32, i32, i32
  }
  func.func @transform_2(%arg0: i32, %arg1: i32) -> (i32, i32, i32) {
    %c0_i32 = arith.constant 0 : i32
    %c0_i32_0 = arith.constant 0 : i32
    return %arg0, %c0_i32, %arg1 : i32, i32, i32
  }
}

</mosaic_0001>

<llo_original>
// kernel: _lambda_.2
$region0: #{_lambda_.2}
  #allocation0 [shape = 'u32[]', space=smem, size = 0x4, offset = 0x4, fixed_abs, tag = 'smem constant byte address 0x4 - core index']
  #allocation1 [shape = 'u32[144,128]{1,0:T(1,128)}', space=vmem, size = 0x12000, scoped, tag = 'internal scratch']
  #allocation2 [shape = 'f32[8,128]{1,0:T(8,128)}', space=vmem, size = 0x1000, scoped, tag = 'scratch operand']
  %s0 = inlined_call_operand.vmem [shape: f32[8,8,128], index: 0, kind: input, shape index: {}]
  %s1 = inlined_call_operand.vmem [shape: f32[8,128], index: 1, kind: input, shape index: {}]
  %s2 = inlined_call_operand.vmem [shape: f32[128,128], index: 2, kind: input, shape index: {}]
  %s3 = inlined_call_operand.vmem [shape: f32[8,128], index: 3, kind: output, shape index: {}]
  %s4 = sld [smem:[#allocation0]]
  $region30: #{_lambda_.2} parent=0
    _
  %s6 = ssub.s32 1, %s4
  %s7 = scalar_select 0, %s6, %s4
  // Predicated region
  $region2: #{_lambda_.2} parent=0 // pred_check
    _
  $region3: #{_lambda_.2} parent=0 // pred_check_branch
    %9 = sbr.rel (0) target = $region5
  $region4: #{_lambda_.2} parent=0 // pred_region
    _
  $region5: #{_lambda_.2} parent=0 // pred_fallthru
    _
  // Predicated region
  $region6: #{_lambda_.2} parent=0 // pred_check
    _
  $region7: #{_lambda_.2} parent=0 // pred_check_branch
    %11 = sbr.rel (0) target = $region9
  $region8: #{_lambda_.2} parent=0 // pred_region
    _
  $region9: #{_lambda_.2} parent=0 // pred_fallthru
    _
  // Predicated region
  $region10: #{_lambda_.2} parent=0 // pred_check
    _
  $region11: #{_lambda_.2} parent=0 // pred_check_branch
    %13 = sbr.rel (0) target = $region13
  $region12: #{_lambda_.2} parent=0 // pred_region
    _
  $region13: #{_lambda_.2} parent=0 // pred_fallthru
    _
  %p14 = scmp.eq.s32.totalorder 0, 0
  // Predicated region
  $region14: #{_lambda_.2} parent=0 // pred_check
    %p15 = pneg %p14
  $region15: #{_lambda_.2} parent=0 // pred_check_branch
    %17 = sbr.rel (%p15) target = $region17
  $region16: #{_lambda_.2} parent=0 // pred_region
    %v18 = vld [vmem:[%s1] sm:$0xff]
    %19 = vst [vmem:[#allocation2] sm:$0xff] %v18
  $region17: #{_lambda_.2} parent=0 // pred_fallthru
    _
  %v20 = vld [vmem:[%s2] sm:$0xff]
  %v21 = vld [vmem:[%s2 + $0x8] sm:$0xff]
  %v22 = vld [vmem:[%s2 + $0x10] sm:$0xff]
  %v23 = vld [vmem:[%s2 + $0x18] sm:$0xff]
  %v24 = vld [vmem:[%s2 + $0x20] sm:$0xff]
  %v25 = vld [vmem:[%s2 + $0x28] sm:$0xff]
  %v26 = vld [vmem:[%s2 + $0x30] sm:$0xff]
  %v27 = vld [vmem:[%s2 + $0x38] sm:$0xff]
  %v28 = vld [vmem:[%s2 + $0x40] sm:$0xff]
  %v29 = vld [vmem:[%s2 + $0x48] sm:$0xff]
  %v30 = vld [vmem:[%s2 + $0x50] sm:$0xff]
  %v31 = vld [vmem:[%s2 + $0x58] sm:$0xff]
  %v32 = vld [vmem:[%s2 + $0x60] sm:$0xff]
  %v33 = vld [vmem:[%s2 + $0x68] sm:$0xff]
  %v34 = vld [vmem:[%s2 + $0x70] sm:$0xff]
  %v35 = vld [vmem:[%s2 + $0x78] sm:$0xff]
  %v36 = vld [vmem:[#allocation2] sm:$0xff]
  %v37 = vld [vmem:[%s0] sm:$0xff]
  %38 = vmatprep.subr.mxu0 0.0
  %39 = vmatpush1.msra.mxu0 %v20
  %40 = vmatprep.subr.mxu0 0.0
  %41 = vmatpush1.msra.mxu0 %v21
  %42 = vmatprep.subr.mxu0 0.0
  %43 = vmatpush1.msra.mxu0 %v22
  %44 = vmatprep.subr.mxu0 0.0
  %45 = vmatpush1.msra.mxu0 %v23
  %46 = vmatprep.subr.mxu0 0.0
  %47 = vmatpush1.msra.mxu0 %v24
  %48 = vmatprep.subr.mxu0 0.0
  %49 = vmatpush1.msra.mxu0 %v25
  %50 = vmatprep.subr.mxu0 0.0
  %51 = vmatpush1.msra.mxu0 %v26
  %52 = vmatprep.subr.mxu0 0.0
  %53 = vmatpush1.msra.mxu0 %v27
  %54 = vmatprep.subr.mxu0 0.0
  %55 = vmatpush1.msra.mxu0 %v28
  %56 = vmatprep.subr.mxu0 0.0
  %57 = vmatpush1.msra.mxu0 %v29
  %58 = vmatprep.subr.mxu0 0.0
  %59 = vmatpush1.msra.mxu0 %v30
  %60 = vmatprep.subr.mxu0 0.0
  %61 = vmatpush1.msra.mxu0 %v31
  %62 = vmatprep.subr.mxu0 0.0
  %63 = vmatpush1.msra.mxu0 %v32
  %64 = vmatprep.subr.mxu0 0.0
  %65 = vmatpush1.msra.mxu0 %v33
  %66 = vmatprep.subr.mxu0 0.0
  %67 = vmatpush1.msra.mxu0 %v34
  %68 = vmatprep.subr.mxu0 0.0
  %69 = vmatpush1.msra.mxu0 %v35
  %70 = vmatprep.subr.mxu0 0.0
  %71 = vmatpush1.msra.mxu0 0.0
  %72 = vmatprep.subr.mxu0 0.0
  %73 = vmatpush1.msra.mxu0 0.0
  %74 = vmatprep.subr.mxu0 0.0
  %75 = vmatpush1.msra.mxu0 0.0
  %76 = vmatprep.subr.mxu0 0.0
  %77 = vmatpush1.msra.mxu0 0.0
  %78 = vmatprep.subr.mxu0 0.0
  %79 = vmatpush1.msra.mxu0 0.0
  %80 = vmatprep.subr.mxu0 0.0
  %81 = vmatpush1.msra.mxu0 0.0
  %82 = vmatprep.subr.mxu0 0.0
  %83 = vmatpush1.msra.mxu0 0.0
  %84 = vmatprep.subr.mxu0 0.0
  %85 = vmatpush1.msra.mxu0 0.0
  %86 = vmatprep.subr.mxu0 0.0
  %87 = vmatpush1.msra.mxu0 0.0
  %88 = vmatprep.subr.mxu0 0.0
  %89 = vmatpush1.msra.mxu0 0.0
  %90 = vmatprep.subr.mxu0 0.0
  %91 = vmatpush1.msra.mxu0 0.0
  %92 = vmatprep.subr.mxu0 0.0
  %93 = vmatpush1.msra.mxu0 0.0
  %94 = vmatprep.subr.mxu0 0.0
  %95 = vmatpush1.msra.mxu0 0.0
  %96 = vmatprep.subr.mxu0 0.0
  %97 = vmatpush1.msra.mxu0 0.0
  %98 = vmatprep.subr.mxu0 0.0
  %99 = vmatpush1.msra.mxu0 0.0
  %100 = vmatprep.subr.mxu0 0.0
  %101 = vmatpush1.msra.mxu0 0.0
  %102 = vmatprep.mubr.f32.mxu0 0.0
  %103 = vmatmul.mubr.f32.gmra.mrb[0].mxu0 %v36
  %v104 = vpop.f32.mrb[0].mxu0
  %v105 = vadd.f32 0.0, %v104
  %v106 = vpop.f32.mrb[0].mxu0
  %107 = vdwg.mxu0
  %v108 = vadd.f32 %v37, %v105
  %v109 = vtanh.pop %v108
  %s110 = scalar_lea.vmem %s0, 8
  %v111 = vld [vmem:[%s110] sm:$0xff]
  %112 = vmatprep.subr.mxu0 0.0
  %113 = vmatpush1.msra.mxu0 %v20
  %114 = vmatprep.subr.mxu0 0.0
  %115 = vmatpush1.msra.mxu0 %v21
  %116 = vmatprep.subr.mxu0 0.0
  %117 = vmatpush1.msra.mxu0 %v22
  %118 = vmatprep.subr.mxu0 0.0
  %119 = vmatpush1.msra.mxu0 %v23
  %120 = vmatprep.subr.mxu0 0.0
  %121 = vmatpush1.msra.mxu0 %v24
  %122 = vmatprep.subr.mxu0 0.0
  %123 = vmatpush1.msra.mxu0 %v25
  %124 = vmatprep.subr.mxu0 0.0
  %125 = vmatpush1.msra.mxu0 %v26
  %126 = vmatprep.subr.mxu0 0.0
  %127 = vmatpush1.msra.mxu0 %v27
  %128 = vmatprep.subr.mxu0 0.0
  %129 = vmatpush1.msra.mxu0 %v28
  %130 = vmatprep.subr.mxu0 0.0
  %131 = vmatpush1.msra.mxu0 %v29
  %132 = vmatprep.subr.mxu0 0.0
  %133 = vmatpush1.msra.mxu0 %v30
  %134 = vmatprep.subr.mxu0 0.0
  %135 = vmatpush1.msra.mxu0 %v31
  %136 = vmatprep.subr.mxu0 0.0
  %137 = vmatpush1.msra.mxu0 %v32
  %138 = vmatprep.subr.mxu0 0.0
  %139 = vmatpush1.msra.mxu0 %v33
  %140 = vmatprep.subr.mxu0 0.0
  %141 = vmatpush1.msra.mxu0 %v34
  %142 = vmatprep.subr.mxu0 0.0
  %143 = vmatpush1.msra.mxu0 %v35
  %144 = vmatprep.subr.mxu0 0.0
  %145 = vmatpush1.msra.mxu0 0.0
  %146 = vmatprep.subr.mxu0 0.0
  %147 = vmatpush1.msra.mxu0 0.0
  %148 = vmatprep.subr.mxu0 0.0
  %149 = vmatpush1.msra.mxu0 0.0
  %150 = vmatprep.subr.mxu0 0.0
  %151 = vmatpush1.msra.mxu0 0.0
  %152 = vmatprep.subr.mxu0 0.0
  %153 = vmatpush1.msra.mxu0 0.0
  %154 = vmatprep.subr.mxu0 0.0
  %155 = vmatpush1.msra.mxu0 0.0
  %156 = vmatprep.subr.mxu0 0.0
  %157 = vmatpush1.msra.mxu0 0.0
  %158 = vmatprep.subr.mxu0 0.0
  %159 = vmatpush1.msra.mxu0 0.0
  %160 = vmatprep.subr.mxu0 0.0
  %161 = vmatpush1.msra.mxu0 0.0
  %162 = vmatprep.subr.mxu0 0.0
  %163 = vmatpush1.msra.mxu0 0.0
  %164 = vmatprep.subr.mxu0 0.0
  %165 = vmatpush1.msra.mxu0 0.0
  %166 = vmatprep.subr.mxu0 0.0
  %167 = vmatpush1.msra.mxu0 0.0
  %168 = vmatprep.subr.mxu0 0.0
  %169 = vmatpush1.msra.mxu0 0.0
  %170 = vmatprep.subr.mxu0 0.0
  %171 = vmatpush1.msra.mxu0 0.0
  %172 = vmatprep.subr.mxu0 0.0
  %173 = vmatpush1.msra.mxu0 0.0
  %174 = vmatprep.subr.mxu0 0.0
  %175 = vmatpush1.msra.mxu0 0.0
  %176 = vmatprep.mubr.f32.mxu0 0.0
  %177 = vmatmul.mubr.f32.gmra.mrb[0].mxu0 %v109
  %v178 = vpop.f32.mrb[0].mxu0
  %v179 = vadd.f32 0.0, %v178
  %v180 = vpop.f32.mrb[0].mxu0
  %181 = vdwg.mxu0
  %v182 = vadd.f32 %v111, %v179
  %v183 = vtanh.pop %v182
  %s184 = scalar_lea.vmem %s0, 16
  %v185 = vld [vmem:[%s184] sm:$0xff]
  %186 = vmatprep.subr.mxu0 0.0
  %187 = vmatpush1.msra.mxu0 %v20
  %188 = vmatprep.subr.mxu0 0.0
  %189 = vmatpush1.msra.mxu0 %v21
  %190 = vmatprep.subr.mxu0 0.0
  %191 = vmatpush1.msra.mxu0 %v22
  %192 = vmatprep.subr.mxu0 0.0
  %193 = vmatpush1.msra.mxu0 %v23
  %194 = vmatprep.subr.mxu0 0.0
  %195 = vmatpush1.msra.mxu0 %v24
  %196 = vmatprep.subr.mxu0 0.0
  %197 = vmatpush1.msra.mxu0 %v25
  %198 = vmatprep.subr.mxu0 0.0
  %199 = vmatpush1.msra.mxu0 %v26
  %200 = vmatprep.subr.mxu0 0.0
  %201 = vmatpush1.msra.mxu0 %v27
  %202 = vmatprep.subr.mxu0 0.0
  %203 = vmatpush1.msra.mxu0 %v28
  %204 = vmatprep.subr.mxu0 0.0
  %205 = vmatpush1.msra.mxu0 %v29
  %206 = vmatprep.subr.mxu0 0.0
  %207 = vmatpush1.msra.mxu0 %v30
  %208 = vmatprep.subr.mxu0 0.0
  %209 = vmatpush1.msra.mxu0 %v31
  %210 = vmatprep.subr.mxu0 0.0
  %211 = vmatpush1.msra.mxu0 %v32
  %212 = vmatprep.subr.mxu0 0.0
  %213 = vmatpush1.msra.mxu0 %v33
  %214 = vmatprep.subr.mxu0 0.0
  %215 = vmatpush1.msra.mxu0 %v34
  %216 = vmatprep.subr.mxu0 0.0
  %217 = vmatpush1.msra.mxu0 %v35
  %218 = vmatprep.subr.mxu0 0.0
  %219 = vmatpush1.msra.mxu0 0.0
  %220 = vmatprep.subr.mxu0 0.0
  %221 = vmatpush1.msra.mxu0 0.0
  %222 = vmatprep.subr.mxu0 0.0
  %223 = vmatpush1.msra.mxu0 0.0
  %224 = vmatprep.subr.mxu0 0.0
  %225 = vmatpush1.msra.mxu0 0.0
  %226 = vmatprep.subr.mxu0 0.0
  %227 = vmatpush1.msra.mxu0 0.0
  %228 = vmatprep.subr.mxu0 0.0
  %229 = vmatpush1.msra.mxu0 0.0
  %230 = vmatprep.subr.mxu0 0.0
  %231 = vmatpush1.msra.mxu0 0.0
  %232 = vmatprep.subr.mxu0 0.0
  %233 = vmatpush1.msra.mxu0 0.0
  %234 = vmatprep.subr.mxu0 0.0
  %235 = vmatpush1.msra.mxu0 0.0
  %236 = vmatprep.subr.mxu0 0.0
  %237 = vmatpush1.msra.mxu0 0.0
  %238 = vmatprep.subr.mxu0 0.0
  %239 = vmatpush1.msra.mxu0 0.0
  %240 = vmatprep.subr.mxu0 0.0
  %241 = vmatpush1.msra.mxu0 0.0
  %242 = vmatprep.subr.mxu0 0.0
  %243 = vmatpush1.msra.mxu0 0.0
  %244 = vmatprep.subr.mxu0 0.0
  %245 = vmatpush1.msra.mxu0 0.0
  %246 = vmatprep.subr.mxu0 0.0
  %247 = vmatpush1.msra.mxu0 0.0
  %248 = vmatprep.subr.mxu0 0.0
  %249 = vmatpush1.msra.mxu0 0.0
  %250 = vmatprep.mubr.f32.mxu0 0.0
  %251 = vmatmul.mubr.f32.gmra.mrb[0].mxu0 %v183
  %v252 = vpop.f32.mrb[0].mxu0
  %v253 = vadd.f32 0.0, %v252
  %v254 = vpop.f32.mrb[0].mxu0
  %255 = vdwg.mxu0
  %v256 = vadd.f32 %v185, %v253
  %v257 = vtanh.pop %v256
  %s258 = scalar_lea.vmem %s0, 24
  %v259 = vld [vmem:[%s258] sm:$0xff]
  %260 = vmatprep.subr.mxu0 0.0
  %261 = vmatpush1.msra.mxu0 %v20
  %262 = vmatprep.subr.mxu0 0.0
  %263 = vmatpush1.msra.mxu0 %v21
  %264 = vmatprep.subr.mxu0 0.0
  %265 = vmatpush1.msra.mxu0 %v22
  %266 = vmatprep.subr.mxu0 0.0
  %267 = vmatpush1.msra.mxu0 %v23
  %268 = vmatprep.subr.mxu0 0.0
  %269 = vmatpush1.msra.mxu0 %v24
  %270 = vmatprep.subr.mxu0 0.0
  %271 = vmatpush1.msra.mxu0 %v25
  %272 = vmatprep.subr.mxu0 0.0
  %273 = vmatpush1.msra.mxu0 %v26
  %274 = vmatprep.subr.mxu0 0.0
  %275 = vmatpush1.msra.mxu0 %v27
  %276 = vmatprep.subr.mxu0 0.0
  %277 = vmatpush1.msra.mxu0 %v28
  %278 = vmatprep.subr.mxu0 0.0
  %279 = vmatpush1.msra.mxu0 %v29
  %280 = vmatprep.subr.mxu0 0.0
  %281 = vmatpush1.msra.mxu0 %v30
  %282 = vmatprep.subr.mxu0 0.0
  %283 = vmatpush1.msra.mxu0 %v31
  %284 = vmatprep.subr.mxu0 0.0
  %285 = vmatpush1.msra.mxu0 %v32
  %286 = vmatprep.subr.mxu0 0.0
  %287 = vmatpush1.msra.mxu0 %v33
  %288 = vmatprep.subr.mxu0 0.0
  %289 = vmatpush1.msra.mxu0 %v34
  %290 = vmatprep.subr.mxu0 0.0
  %291 = vmatpush1.msra.mxu0 %v35
  %292 = vmatprep.subr.mxu0 0.0
  %293 = vmatpush1.msra.mxu0 0.0
  %294 = vmatprep.subr.mxu0 0.0
  %295 = vmatpush1.msra.mxu0 0.0
  %296 = vmatprep.subr.mxu0 0.0
  %297 = vmatpush1.msra.mxu0 0.0
  %298 = vmatprep.subr.mxu0 0.0
  %299 = vmatpush1.msra.mxu0 0.0
  %300 = vmatprep.subr.mxu0 0.0
  %301 = vmatpush1.msra.mxu0 0.0
  %302 = vmatprep.subr.mxu0 0.0
  %303 = vmatpush1.msra.mxu0 0.0
  %304 = vmatprep.subr.mxu0 0.0
  %305 = vmatpush1.msra.mxu0 0.0
  %306 = vmatprep.subr.mxu0 0.0
  %307 = vmatpush1.msra.mxu0 0.0
  %308 = vmatprep.subr.mxu0 0.0
  %309 = vmatpush1.msra.mxu0 0.0
  %310 = vmatprep.subr.mxu0 0.0
  %311 = vmatpush1.msra.mxu0 0.0
  %312 = vmatprep.subr.mxu0 0.0
  %313 = vmatpush1.msra.mxu0 0.0
  %314 = vmatprep.subr.mxu0 0.0
  %315 = vmatpush1.msra.mxu0 0.0
  %316 = vmatprep.subr.mxu0 0.0
  %317 = vmatpush1.msra.mxu0 0.0
  %318 = vmatprep.subr.mxu0 0.0
  %319 = vmatpush1.msra.mxu0 0.0
  %320 = vmatprep.subr.mxu0 0.0
  %321 = vmatpush1.msra.mxu0 0.0
  %322 = vmatprep.subr.mxu0 0.0
  %323 = vmatpush1.msra.mxu0 0.0
  %324 = vmatprep.mubr.f32.mxu0 0.0
  %325 = vmatmul.mubr.f32.gmra.mrb[0].mxu0 %v257
  %v326 = vpop.f32.mrb[0].mxu0
  %v327 = vadd.f32 0.0, %v326
  %v328 = vpop.f32.mrb[0].mxu0
  %329 = vdwg.mxu0
  %v330 = vadd.f32 %v259, %v327
  %v331 = vtanh.pop %v330
  %s332 = scalar_lea.vmem %s0, 32
  %v333 = vld [vmem:[%s332] sm:$0xff]
  %334 = vmatprep.subr.mxu0 0.0
  %335 = vmatpush1.msra.mxu0 %v20
  %336 = vmatprep.subr.mxu0 0.0
  %337 = vmatpush1.msra.mxu0 %v21
  %338 = vmatprep.subr.mxu0 0.0
  %339 = vmatpush1.msra.mxu0 %v22
  %340 = vmatprep.subr.mxu0 0.0
  %341 = vmatpush1.msra.mxu0 %v23
  %342 = vmatprep.subr.mxu0 0.0
  %343 = vmatpush1.msra.mxu0 %v24
  %344 = vmatprep.subr.mxu0 0.0
  %345 = vmatpush1.msra.mxu0 %v25
  %346 = vmatprep.subr.mxu0 0.0
  %347 = vmatpush1.msra.mxu0 %v26
  %348 = vmatprep.subr.mxu0 0.0
  %349 = vmatpush1.msra.mxu0 %v27
  %350 = vmatprep.subr.mxu0 0.0
  %351 = vmatpush1.msra.mxu0 %v28
  %352 = vmatprep.subr.mxu0 0.0
  %353 = vmatpush1.msra.mxu0 %v29
  %354 = vmatprep.subr.mxu0 0.0
  %355 = vmatpush1.msra.mxu0 %v30
  %356 = vmatprep.subr.mxu0 0.0
  %357 = vmatpush1.msra.mxu0 %v31
  %358 = vmatprep.subr.mxu0 0.0
  %359 = vmatpush1.msra.mxu0 %v32
  %360 = vmatprep.subr.mxu0 0.0
  %361 = vmatpush1.msra.mxu0 %v33
  %362 = vmatprep.subr.mxu0 0.0
  %363 = vmatpush1.msra.mxu0 %v34
  %364 = vmatprep.subr.mxu0 0.0
  %365 = vmatpush1.msra.mxu0 %v35
  %366 = vmatprep.subr.mxu0 0.0
  %367 = vmatpush1.msra.mxu0 0.0
  %368 = vmatprep.subr.mxu0 0.0
  %369 = vmatpush1.msra.mxu0 0.0
  %370 = vmatprep.subr.mxu0 0.0
  %371 = vmatpush1.msra.mxu0 0.0
  %372 = vmatprep.subr.mxu0 0.0
  %373 = vmatpush1.msra.mxu0 0.0
  %374 = vmatprep.subr.mxu0 0.0
  %375 = vmatpush1.msra.mxu0 0.0
  %376 = vmatprep.subr.mxu0 0.0
  %377 = vmatpush1.msra.mxu0 0.0
  %378 = vmatprep.subr.mxu0 0.0
  %379 = vmatpush1.msra.mxu0 0.0
  %380 = vmatprep.subr.mxu0 0.0
  %381 = vmatpush1.msra.mxu0 0.0
  %382 = vmatprep.subr.mxu0 0.0
  %383 = vmatpush1.msra.mxu0 0.0
  %384 = vmatprep.subr.mxu0 0.0
  %385 = vmatpush1.msra.mxu0 0.0
  %386 = vmatprep.subr.mxu0 0.0
  %387 = vmatpush1.msra.mxu0 0.0
  %388 = vmatprep.subr.mxu0 0.0
  %389 = vmatpush1.msra.mxu0 0.0
  %390 = vmatprep.subr.mxu0 0.0
  %391 = vmatpush1.msra.mxu0 0.0
  %392 = vmatprep.subr.mxu0 0.0
  %393 = vmatpush1.msra.mxu0 0.0
  %394 = vmatprep.subr.mxu0 0.0
  %395 = vmatpush1.msra.mxu0 0.0
  %396 = vmatprep.subr.mxu0 0.0
  %397 = vmatpush1.msra.mxu0 0.0
  %398 = vmatprep.mubr.f32.mxu0 0.0
  %399 = vmatmul.mubr.f32.gmra.mrb[0].mxu0 %v331
  %v400 = vpop.f32.mrb[0].mxu0
  %v401 = vadd.f32 0.0, %v400
  %v402 = vpop.f32.mrb[0].mxu0
  %403 = vdwg.mxu0
  %v404 = vadd.f32 %v333, %v401
  %v405 = vtanh.pop %v404
  %s406 = scalar_lea.vmem %s0, 40
  %v407 = vld [vmem:[%s406] sm:$0xff]
  %408 = vmatprep.subr.mxu0 0.0
  %409 = vmatpush1.msra.mxu0 %v20
  %410 = vmatprep.subr.mxu0 0.0
  %411 = vmatpush1.msra.mxu0 %v21
  %412 = vmatprep.subr.mxu0 0.0
  %413 = vmatpush1.msra.mxu0 %v22
  %414 = vmatprep.subr.mxu0 0.0
  %415 = vmatpush1.msra.mxu0 %v23
  %416 = vmatprep.subr.mxu0 0.0
  %417 = vmatpush1.msra.mxu0 %v24
  %418 = vmatprep.subr.mxu0 0.0
  %419 = vmatpush1.msra.mxu0 %v25
  %420 = vmatprep.subr.mxu0 0.0
  %421 = vmatpush1.msra.mxu0 %v26
  %422 = vmatprep.subr.mxu0 0.0
  %423 = vmatpush1.msra.mxu0 %v27
  %424 = vmatprep.subr.mxu0 0.0
  %425 = vmatpush1.msra.mxu0 %v28
  %426 = vmatprep.subr.mxu0 0.0
  %427 = vmatpush1.msra.mxu0 %v29
  %428 = vmatprep.subr.mxu0 0.0
  %429 = vmatpush1.msra.mxu0 %v30
  %430 = vmatprep.subr.mxu0 0.0
  %431 = vmatpush1.msra.mxu0 %v31
  %432 = vmatprep.subr.mxu0 0.0
  %433 = vmatpush1.msra.mxu0 %v32
  %434 = vmatprep.subr.mxu0 0.0
  %435 = vmatpush1.msra.mxu0 %v33
  %436 = vmatprep.subr.mxu0 0.0
  %437 = vmatpush1.msra.mxu0 %v34
  %438 = vmatprep.subr.mxu0 0.0
  %439 = vmatpush1.msra.mxu0 %v35
  %440 = vmatprep.subr.mxu0 0.0
  %441 = vmatpush1.msra.mxu0 0.0
  %442 = vmatprep.subr.mxu0 0.0
  %443 = vmatpush1.msra.mxu0 0.0
  %444 = vmatprep.subr.mxu0 0.0
  %445 = vmatpush1.msra.mxu0 0.0
  %446 = vmatprep.subr.mxu0 0.0
  %447 = vmatpush1.msra.mxu0 0.0
  %448 = vmatprep.subr.mxu0 0.0
  %449 = vmatpush1.msra.mxu0 0.0
  %450 = vmatprep.subr.mxu0 0.0
  %451 = vmatpush1.msra.mxu0 0.0
  %452 = vmatprep.subr.mxu0 0.0
  %453 = vmatpush1.msra.mxu0 0.0
  %454 = vmatprep.subr.mxu0 0.0
  %455 = vmatpush1.msra.mxu0 0.0
  %456 = vmatprep.subr.mxu0 0.0
  %457 = vmatpush1.msra.mxu0 0.0
  %458 = vmatprep.subr.mxu0 0.0
  %459 = vmatpush1.msra.mxu0 0.0
  %460 = vmatprep.subr.mxu0 0.0
  %461 = vmatpush1.msra.mxu0 0.0
  %462 = vmatprep.subr.mxu0 0.0
  %463 = vmatpush1.msra.mxu0 0.0
  %464 = vmatprep.subr.mxu0 0.0
  %465 = vmatpush1.msra.mxu0 0.0
  %466 = vmatprep.subr.mxu0 0.0
  %467 = vmatpush1.msra.mxu0 0.0
  %468 = vmatprep.subr.mxu0 0.0
  %469 = vmatpush1.msra.mxu0 0.0
  %470 = vmatprep.subr.mxu0 0.0
  %471 = vmatpush1.msra.mxu0 0.0
  %472 = vmatprep.mubr.f32.mxu0 0.0
  %473 = vmatmul.mubr.f32.gmra.mrb[0].mxu0 %v405
  %v474 = vpop.f32.mrb[0].mxu0
  %v475 = vadd.f32 0.0, %v474
  %v476 = vpop.f32.mrb[0].mxu0
  %477 = vdwg.mxu0
  %v478 = vadd.f32 %v407, %v475
  %v479 = vtanh.pop %v478
  %s480 = scalar_lea.vmem %s0, 48
  %v481 = vld [vmem:[%s480] sm:$0xff]
  %482 = vmatprep.subr.mxu0 0.0
  %483 = vmatpush1.msra.mxu0 %v20
  %484 = vmatprep.subr.mxu0 0.0
  %485 = vmatpush1.msra.mxu0 %v21
  %486 = vmatprep.subr.mxu0 0.0
  %487 = vmatpush1.msra.mxu0 %v22
  %488 = vmatprep.subr.mxu0 0.0
  %489 = vmatpush1.msra.mxu0 %v23
  %490 = vmatprep.subr.mxu0 0.0
  %491 = vmatpush1.msra.mxu0 %v24
  %492 = vmatprep.subr.mxu0 0.0
  %493 = vmatpush1.msra.mxu0 %v25
  %494 = vmatprep.subr.mxu0 0.0
  %495 = vmatpush1.msra.mxu0 %v26
  %496 = vmatprep.subr.mxu0 0.0
  %497 = vmatpush1.msra.mxu0 %v27
  %498 = vmatprep.subr.mxu0 0.0
  %499 = vmatpush1.msra.mxu0 %v28
  %500 = vmatprep.subr.mxu0 0.0
  %501 = vmatpush1.msra.mxu0 %v29
  %502 = vmatprep.subr.mxu0 0.0
  %503 = vmatpush1.msra.mxu0 %v30
  %504 = vmatprep.subr.mxu0 0.0
  %505 = vmatpush1.msra.mxu0 %v31
  %506 = vmatprep.subr.mxu0 0.0
  %507 = vmatpush1.msra.mxu0 %v32
  %508 = vmatprep.subr.mxu0 0.0
  %509 = vmatpush1.msra.mxu0 %v33
  %510 = vmatprep.subr.mxu0 0.0
  %511 = vmatpush1.msra.mxu0 %v34
  %512 = vmatprep.subr.mxu0 0.0
  %513 = vmatpush1.msra.mxu0 %v35
  %514 = vmatprep.subr.mxu0 0.0
  %515 = vmatpush1.msra.mxu0 0.0
  %516 = vmatprep.subr.mxu0 0.0
  %517 = vmatpush1.msra.mxu0 0.0
  %518 = vmatprep.subr.mxu0 0.0
  %519 = vmatpush1.msra.mxu0 0.0
  %520 = vmatprep.subr.mxu0 0.0
  %521 = vmatpush1.msra.mxu0 0.0
  %522 = vmatprep.subr.mxu0 0.0
  %523 = vmatpush1.msra.mxu0 0.0
  %524 = vmatprep.subr.mxu0 0.0
  %525 = vmatpush1.msra.mxu0 0.0
  %526 = vmatprep.subr.mxu0 0.0
  %527 = vmatpush1.msra.mxu0 0.0
  %528 = vmatprep.subr.mxu0 0.0
  %529 = vmatpush1.msra.mxu0 0.0
  %530 = vmatprep.subr.mxu0 0.0
  %531 = vmatpush1.msra.mxu0 0.0
  %532 = vmatprep.subr.mxu0 0.0
  %533 = vmatpush1.msra.mxu0 0.0
  %534 = vmatprep.subr.mxu0 0.0
  %535 = vmatpush1.msra.mxu0 0.0
  %536 = vmatprep.subr.mxu0 0.0
  %537 = vmatpush1.msra.mxu0 0.0
  %538 = vmatprep.subr.mxu0 0.0
  %539 = vmatpush1.msra.mxu0 0.0
  %540 = vmatprep.subr.mxu0 0.0
  %541 = vmatpush1.msra.mxu0 0.0
  %542 = vmatprep.subr.mxu0 0.0
  %543 = vmatpush1.msra.mxu0 0.0
  %544 = vmatprep.subr.mxu0 0.0
  %545 = vmatpush1.msra.mxu0 0.0
  %546 = vmatprep.mubr.f32.mxu0 0.0
  %547 = vmatmul.mubr.f32.gmra.mrb[0].mxu0 %v479
  %v548 = vpop.f32.mrb[0].mxu0
  %v549 = vadd.f32 0.0, %v548
  %v550 = vpop.f32.mrb[0].mxu0
  %551 = vdwg.mxu0
  %v552 = vadd.f32 %v481, %v549
  %v553 = vtanh.pop %v552
  %s554 = scalar_lea.vmem %s0, 56
  %v555 = vld [vmem:[%s554] sm:$0xff]
  %556 = vmatprep.subr.mxu0 0.0
  %557 = vmatpush1.msra.mxu0 %v20
  %558 = vmatprep.subr.mxu0 0.0
  %559 = vmatpush1.msra.mxu0 %v21
  %560 = vmatprep.subr.mxu0 0.0
  %561 = vmatpush1.msra.mxu0 %v22
  %562 = vmatprep.subr.mxu0 0.0
  %563 = vmatpush1.msra.mxu0 %v23
  %564 = vmatprep.subr.mxu0 0.0
  %565 = vmatpush1.msra.mxu0 %v24
  %566 = vmatprep.subr.mxu0 0.0
  %567 = vmatpush1.msra.mxu0 %v25
  %568 = vmatprep.subr.mxu0 0.0
  %569 = vmatpush1.msra.mxu0 %v26
  %570 = vmatprep.subr.mxu0 0.0
  %571 = vmatpush1.msra.mxu0 %v27
  %572 = vmatprep.subr.mxu0 0.0
  %573 = vmatpush1.msra.mxu0 %v28
  %574 = vmatprep.subr.mxu0 0.0
  %575 = vmatpush1.msra.mxu0 %v29
  %576 = vmatprep.subr.mxu0 0.0
  %577 = vmatpush1.msra.mxu0 %v30
  %578 = vmatprep.subr.mxu0 0.0
  %579 = vmatpush1.msra.mxu0 %v31
  %580 = vmatprep.subr.mxu0 0.0
  %581 = vmatpush1.msra.mxu0 %v32
  %582 = vmatprep.subr.mxu0 0.0
  %583 = vmatpush1.msra.mxu0 %v33
  %584 = vmatprep.subr.mxu0 0.0
  %585 = vmatpush1.msra.mxu0 %v34
  %586 = vmatprep.subr.mxu0 0.0
  %587 = vmatpush1.msra.mxu0 %v35
  %588 = vmatprep.subr.mxu0 0.0
  %589 = vmatpush1.msra.mxu0 0.0
  %590 = vmatprep.subr.mxu0 0.0
  %591 = vmatpush1.msra.mxu0 0.0
  %592 = vmatprep.subr.mxu0 0.0
  %593 = vmatpush1.msra.mxu0 0.0
  %594 = vmatprep.subr.mxu0 0.0
  %595 = vmatpush1.msra.mxu0 0.0
  %596 = vmatprep.subr.mxu0 0.0
  %597 = vmatpush1.msra.mxu0 0.0
  %598 = vmatprep.subr.mxu0 0.0
  %599 = vmatpush1.msra.mxu0 0.0
  %600 = vmatprep.subr.mxu0 0.0
  %601 = vmatpush1.msra.mxu0 0.0
  %602 = vmatprep.subr.mxu0 0.0
  %603 = vmatpush1.msra.mxu0 0.0
  %604 = vmatprep.subr.mxu0 0.0
  %605 = vmatpush1.msra.mxu0 0.0
  %606 = vmatprep.subr.mxu0 0.0
  %607 = vmatpush1.msra.mxu0 0.0
  %608 = vmatprep.subr.mxu0 0.0
  %609 = vmatpush1.msra.mxu0 0.0
  %610 = vmatprep.subr.mxu0 0.0
  %611 = vmatpush1.msra.mxu0 0.0
  %612 = vmatprep.subr.mxu0 0.0
  %613 = vmatpush1.msra.mxu0 0.0
  %614 = vmatprep.subr.mxu0 0.0
  %615 = vmatpush1.msra.mxu0 0.0
  %616 = vmatprep.subr.mxu0 0.0
  %617 = vmatpush1.msra.mxu0 0.0
  %618 = vmatprep.subr.mxu0 0.0
  %619 = vmatpush1.msra.mxu0 0.0
  %620 = vmatprep.mubr.f32.mxu0 0.0
  %621 = vmatmul.mubr.f32.gmra.mrb[0].mxu0 %v553
  %v622 = vpop.f32.mrb[0].mxu0
  %v623 = vadd.f32 0.0, %v622
  %v624 = vpop.f32.mrb[0].mxu0
  %625 = vdwg.mxu0
  %v626 = vadd.f32 %v555, %v623
  %v627 = vtanh.pop %v626
  %628 = vst [vmem:[#allocation2] sm:$0xff] %v627
  // Predicated region
  $region18: #{_lambda_.2} parent=0 // pred_check
    %p629 = pneg %p14
  $region19: #{_lambda_.2} parent=0 // pred_check_branch
    %631 = sbr.rel (%p629) target = $region21
  $region20: #{_lambda_.2} parent=0 // pred_region
    %632 = vst [vmem:[%s3] sm:$0xff] %v627
  $region21: #{_lambda_.2} parent=0 // pred_fallthru
    _
  // Predicated region
  $region22: #{_lambda_.2} parent=0 // pred_check
    _
  $region23: #{_lambda_.2} parent=0 // pred_check_branch
    %634 = sbr.rel (0) target = $region25
  $region24: #{_lambda_.2} parent=0 // pred_region
    _
  $region25: #{_lambda_.2} parent=0 // pred_fallthru
    _
  // Predicated region
  $region26: #{_lambda_.2} parent=0 // pred_check
    _
  $region27: #{_lambda_.2} parent=0 // pred_check_branch
    %636 = sbr.rel (0) target = $region29
  $region28: #{_lambda_.2} parent=0 // pred_region
    _
  $region29: #{_lambda_.2} parent=0 // pred_fallthru
    _

// kernel: _lambda_.3
$region0: #{_lambda_.3}
  #allocation0 [shape = 'u32[]', space=smem, size = 0x4, offset = 0x4, fixed_abs, tag = 'smem constant byte address 0x4 - core index']
  #allocation1 [shape = 'u32[144,128]{1,0:T(1,128)}', space=vmem, size = 0x12000, scoped, tag = 'internal scratch']
  %s0 = inlined_call_operand.vmem [shape: f32[8,1,128], index: 0, kind: input, shape index: {}]
  %s1 = inlined_call_operand.vmem [shape: f32[8,128,128], index: 1, kind: input, shape index: {}]
  %s2 = inlined_call_operand.vmem [shape: f32[8,1,128], index: 2, kind: output, shape index: {}]
  %s3 = sld [smem:[#allocation0]]
  $region41: #{_lambda_.3} parent=0
    _
  %s5 = ssub.s32 1, %s3
  %s6 = scalar_select 0, %s5, %s3
  loop: start=0, step=1, limit=10
  $region2: #{_lambda_.3} parent=0 // loop_pre_header
    _
  $region3: #{_lambda_.3} parent=0 // loop_header
    %s8 = sphi 0, %s12
    %p9 = scmp.ge.s32.totalorder %s8, 10
    %s15 = sphi 0, %s27
    %s16 = sphi 0, %s23
    %s17 = sphi 0, %s15
    %s18 = sphi 0, %s16
    %s19 = sphi 0, %s17
    %s20 = sphi 0, %s18
    %s30 = sphi 0, %s32
    %s33 = sphi 0, %s30
    %s34 = sphi 0, %s33
    %s50 = sphi 0, %s34
    %s58 = sphi 0, %s60
    %s61 = sphi 0, %s58
    %s62 = sphi 0, %s61
    %s78 = sphi 0, %s62
    %s86 = sphi 0, %s88
    %s89 = sphi 0, %s86
    %s90 = sphi 0, %s89
    %s106 = sphi 0, %s90
  $region4: #{_lambda_.3} parent=0 // loop_header_branch
    %11 = sbr.rel (%p9) target = $region8
  $region5: #{_lambda_.3} parent=0 // loop_body
    %s13 = ssub.s32 %s8, 1
    %s14 = ssub.s32 %s8, 2
    %s21 = sadd.s32 1, %s16
    %p22 = scmp.ge.s32.totalorder %s21, 1
    %s23 = scalar_select %p22, 0, %s21
    %s24 = sadd.s32 1, %s15
    %s25 = scalar_select %p22, %s24, %s15
    %p26 = scmp.ge.s32.totalorder %s25, 8
    %s27 = scalar_select %p26, 0, %s25
    %s28 = ssub.s32 %s15, %s27
    %p29 = scmp.eq.s32.totalorder %s28, 0
    %s31 = sadd.s32 %s30, 1
    %s32 = scalar_select %p29, %s30, %s31
    %p35 = pneg %p29
    %p36 = scmp.eq.s32.totalorder %s8, 7
    %p37 = por %p35, %p36
    %p38 = scmp.ne.s32.totalorder %s30, %s33
    %p39 = scmp.eq.s32.totalorder %s8, 0
    %p40 = por %p38, %p39
    %p41 = scmp.ne.s32.totalorder %s30, %s33
    %p42 = scmp.eq.s32.totalorder %s13, 7
    %p43 = por %p41, %p42
    %p44 = scmp.ne.s32.totalorder %s33, %s34
    %p45 = scmp.eq.s32.totalorder %s13, 0
    %p46 = por %p44, %p45
    %p47 = scmp.ne.s32.totalorder %s33, %s34
    %p48 = scmp.eq.s32.totalorder %s14, 7
    %p49 = por %p47, %p48
    %p51 = scmp.ne.s32.totalorder %s34, %s50
    %p52 = scmp.eq.s32.totalorder %s14, 0
    %p53 = por %p51, %p52
    %s54 = ssub.s32 %s15, %s27
    %s55 = ssub.s32 %s16, %s23
    %s56 = sor.u32 %s54, %s55
    %p57 = scmp.eq.s32.totalorder %s56, 0
    %s59 = sadd.s32 %s58, 1
    %s60 = scalar_select %p57, %s58, %s59
    %p63 = pneg %p57
    %p64 = scmp.eq.s32.totalorder %s8, 7
    %p65 = por %p63, %p64
    %p66 = scmp.ne.s32.totalorder %s58, %s61
    %p67 = scmp.eq.s32.totalorder %s8, 0
    %p68 = por %p66, %p67
    %p69 = scmp.ne.s32.totalorder %s58, %s61
    %p70 = scmp.eq.s32.totalorder %s13, 7
    %p71 = por %p69, %p70
    %p72 = scmp.ne.s32.totalorder %s61, %s62
    %p73 = scmp.eq.s32.totalorder %s13, 0
    %p74 = por %p72, %p73
    %p75 = scmp.ne.s32.totalorder %s61, %s62
    %p76 = scmp.eq.s32.totalorder %s14, 7
    %p77 = por %p75, %p76
    %p79 = scmp.ne.s32.totalorder %s62, %s78
    %p80 = scmp.eq.s32.totalorder %s14, 0
    %p81 = por %p79, %p80
    %s82 = ssub.s32 %s15, %s27
    %s83 = ssub.s32 %s16, %s23
    %s84 = sor.u32 %s82, %s83
    %p85 = scmp.eq.s32.totalorder %s84, 0
    %s87 = sadd.s32 %s86, 1
    %s88 = scalar_select %p85, %s86, %s87
    %p91 = pneg %p85
    %p92 = scmp.eq.s32.totalorder %s8, 7
    %p93 = por %p91, %p92
    %p94 = scmp.ne.s32.totalorder %s86, %s89
    %p95 = scmp.eq.s32.totalorder %s8, 0
    %p96 = por %p94, %p95
    %p97 = scmp.ne.s32.totalorder %s86, %s89
    %p98 = scmp.eq.s32.totalorder %s13, 7
    %p99 = por %p97, %p98
    %p100 = scmp.ne.s32.totalorder %s89, %s90
    %p101 = scmp.eq.s32.totalorder %s13, 0
    %p102 = por %p100, %p101
    %p103 = scmp.ne.s32.totalorder %s89, %s90
    %p104 = scmp.eq.s32.totalorder %s14, 7
    %p105 = por %p103, %p104
    %p107 = scmp.ne.s32.totalorder %s90, %s106
    %p108 = scmp.eq.s32.totalorder %s14, 0
    %p109 = por %p107, %p108
    %p110 = scmp.le.s32.totalorder 1, %s8
    %p111 = scmp.lt.s32.totalorder %s8, 9
    %p112 = pnand %p110, %p111
    %p113 = pneg %p112
    // Predicated region
    $region9: #{_lambda_.3} parent=5 // pred_check
      _
    $region10: #{_lambda_.3} parent=5 // pred_check_branch
      %115 = sbr.rel (%p112) target = $region12
    $region11: #{_lambda_.3} parent=5 // pred_region
      %s116 = ssub.s32 %s8, 1
    $region12: #{_lambda_.3} parent=5 // pred_fallthru
      _
    %p117 = scmp.lt.s32.totalorder %s8, 8
    // Predicated region
    $region13: #{_lambda_.3} parent=5 // pred_check
      %p118 = pneg %p117
    $region14: #{_lambda_.3} parent=5 // pred_check_branch
      %120 = sbr.rel (%p118) target = $region16
    $region15: #{_lambda_.3} parent=5 // pred_region
      // Predicated region
      $region17: #{_lambda_.3} parent=15 // pred_check
        %p121 = pneg %p40
      $region18: #{_lambda_.3} parent=15 // pred_check_branch
        %123 = sbr.rel (%p121) target = $region20
      $region19: #{_lambda_.3} parent=15 // pred_region
        %p124 = scmp.lt.s32.totalorder %s15, 7
        %s125 = scalar_select %p124, %s15, 7
        %s126 = scalar_lea.vmem %s0, %s125
      $region20: #{_lambda_.3} parent=15 // pred_fallthru
        _
      // Predicated region
      $region21: #{_lambda_.3} parent=15 // pred_check
        %p127 = pneg %p68
      $region22: #{_lambda_.3} parent=15 // pred_check_branch
        %129 = sbr.rel (%p127) target = $region24
      $region23: #{_lambda_.3} parent=15 // pred_region
        %s130 = smul.u32 16, %s16
        %p131 = scmp.lt.s32.totalorder %s15, 7
        %s132 = scalar_select %p131, %s15, 7
        %p133 = scmp.lt.s32.totalorder %s130, 15
        %s134 = scalar_select %p133, %s130, 15
        %s135 = smul.addr %s132, 16
        %s136 = sadd.s32 %s134, %s135
        %s137 = smul.addr %s136, 8
        %s138 = scalar_lea.vmem %s1, %s137
        %s139 = smul.u32 16, %s16
      $region24: #{_lambda_.3} parent=15 // pred_fallthru
        _
    $region16: #{_lambda_.3} parent=5 // pred_fallthru
      _
    %p140 = scmp.le.s32.totalorder 1, %s8
    %p141 = scmp.lt.s32.totalorder %s8, 9
    %p142 = pnand %p140, %p141
    %p143 = pneg %p142
    // Predicated region
    $region25: #{_lambda_.3} parent=5 // pred_check
      _
    $region26: #{_lambda_.3} parent=5 // pred_check_branch
      %145 = sbr.rel (%p142) target = $region28
    $region27: #{_lambda_.3} parent=5 // pred_region
      %s146 = ssub.s32 %s8, 1
      %p147 = scmp.lt.s32.totalorder %s17, 7
      %s148 = scalar_select %p147, %s17, 7
      %s149 = scalar_lea.vmem %s0, %s148
      %p150 = pneg %p46
      %p151 = pneg %p43
      %s152 = smul.u32 16, %s18
      %p153 = scmp.lt.s32.totalorder %s17, 7
      %s154 = scalar_select %p153, %s17, 7
      %p155 = scmp.lt.s32.totalorder %s152, 15
      %s156 = scalar_select %p155, %s152, 15
      %s157 = smul.addr %s154, 16
      %s158 = sadd.s32 %s156, %s157
      %s159 = smul.addr %s158, 8
      %s160 = scalar_lea.vmem %s1, %s159
      %p161 = pneg %p74
      %p162 = pneg %p71
      %p163 = pneg %p102
      %p164 = pneg %p99
      %p165 = scmp.lt.s32.totalorder %s17, 7
      %s166 = scalar_select %p165, %s17, 7
      %p167 = scmp.lt.s32.totalorder %s18, 0
      %s168 = scalar_select %p167, %s18, 0
      %s169 = sadd.s32 %s168, %s166
      %s170 = scalar_lea.vmem %s2, %s169
      %p171 = scmp.lt.s32.totalorder %s17, 7
      %s172 = scalar_select %p171, %s17, 7
      %s173 = scalar_lea.vmem %s0, %s172
      %s174 = smul.u32 16, %s18
      %p175 = scmp.lt.s32.totalorder %s17, 7
      %s176 = scalar_select %p175, %s17, 7
      %p177 = scmp.lt.s32.totalorder %s174, 15
      %s178 = scalar_select %p177, %s174, 15
      %s179 = smul.addr %s176, 16
      %s180 = sadd.s32 %s178, %s179
      %s181 = smul.addr %s180, 8
      %s182 = scalar_lea.vmem %s1, %s181
      %s183 = smul.u32 16, %s18
      %p184 = scmp.lt.s32.totalorder %s17, 7
      %s185 = scalar_select %p184, %s17, 7
      %p186 = scmp.lt.s32.totalorder %s18, 0
      %s187 = scalar_select %p186, %s18, 0
      %s188 = sadd.s32 %s187, %s185
      %s189 = scalar_lea.vmem %s2, %s188
      %v190 = vld [vmem:[%s173] sm:$0x1]
      %v191 = vld [vmem:[%s182] sm:$0xff]
      %v192 = vld [vmem:[%s182 + $0x8] sm:$0xff]
      %v193 = vld [vmem:[%s182 + $0x10] sm:$0xff]
      %v194 = vld [vmem:[%s182 + $0x18] sm:$0xff]
      %v195 = vld [vmem:[%s182 + $0x20] sm:$0xff]
      %v196 = vld [vmem:[%s182 + $0x28] sm:$0xff]
      %v197 = vld [vmem:[%s182 + $0x30] sm:$0xff]
      %v198 = vld [vmem:[%s182 + $0x38] sm:$0xff]
      %v199 = vld [vmem:[%s182 + $0x40] sm:$0xff]
      %v200 = vld [vmem:[%s182 + $0x48] sm:$0xff]
      %v201 = vld [vmem:[%s182 + $0x50] sm:$0xff]
      %v202 = vld [vmem:[%s182 + $0x58] sm:$0xff]
      %v203 = vld [vmem:[%s182 + $0x60] sm:$0xff]
      %v204 = vld [vmem:[%s182 + $0x68] sm:$0xff]
      %v205 = vld [vmem:[%s182 + $0x70] sm:$0xff]
      %v206 = vld [vmem:[%s182 + $0x78] sm:$0xff]
      %207 = vmatprep.subr.mxu0 0.0
      %208 = vmatpush1.xpose.msra.mxu0 %v191
      %209 = vmatprep.subr.mxu0 0.0
      %210 = vmatpush1.xpose.msra.mxu0 %v192
      %211 = vmatprep.subr.mxu0 0.0
      %212 = vmatpush1.xpose.msra.mxu0 %v193
      %213 = vmatprep.subr.mxu0 0.0
      %214 = vmatpush1.xpose.msra.mxu0 %v194
      %215 = vmatprep.subr.mxu0 0.0
      %216 = vmatpush1.xpose.msra.mxu0 %v195
      %217 = vmatprep.subr.mxu0 0.0
      %218 = vmatpush1.xpose.msra.mxu0 %v196
      %219 = vmatprep.subr.mxu0 0.0
      %220 = vmatpush1.xpose.msra.mxu0 %v197
      %221 = vmatprep.subr.mxu0 0.0
      %222 = vmatpush1.xpose.msra.mxu0 %v198
      %223 = vmatprep.subr.mxu0 0.0
      %224 = vmatpush1.xpose.msra.mxu0 %v199
      %225 = vmatprep.subr.mxu0 0.0
      %226 = vmatpush1.xpose.msra.mxu0 %v200
      %227 = vmatprep.subr.mxu0 0.0
      %228 = vmatpush1.xpose.msra.mxu0 %v201
      %229 = vmatprep.subr.mxu0 0.0
      %230 = vmatpush1.xpose.msra.mxu0 %v202
      %231 = vmatprep.subr.mxu0 0.0
      %232 = vmatpush1.xpose.msra.mxu0 %v203
      %233 = vmatprep.subr.mxu0 0.0
      %234 = vmatpush1.xpose.msra.mxu0 %v204
      %235 = vmatprep.subr.mxu0 0.0
      %236 = vmatpush1.xpose.msra.mxu0 %v205
      %237 = vmatprep.subr.mxu0 0.0
      %238 = vmatpush1.xpose.msra.mxu0 %v206
      %239 = vmatprep.subr.mxu0 0.0
      %240 = vmatpush1.xpose.msra.mxu0 0.0
      %241 = vmatprep.subr.mxu0 0.0
      %242 = vmatpush1.xpose.msra.mxu0 0.0
      %243 = vmatprep.subr.mxu0 0.0
      %244 = vmatpush1.xpose.msra.mxu0 0.0
      %245 = vmatprep.subr.mxu0 0.0
      %246 = vmatpush1.xpose.msra.mxu0 0.0
      %247 = vmatprep.subr.mxu0 0.0
      %248 = vmatpush1.xpose.msra.mxu0 0.0
      %249 = vmatprep.subr.mxu0 0.0
      %250 = vmatpush1.xpose.msra.mxu0 0.0
      %251 = vmatprep.subr.mxu0 0.0
      %252 = vmatpush1.xpose.msra.mxu0 0.0
      %253 = vmatprep.subr.mxu0 0.0
      %254 = vmatpush1.xpose.msra.mxu0 0.0
      %255 = vmatprep.subr.mxu0 0.0
      %256 = vmatpush1.xpose.msra.mxu0 0.0
      %257 = vmatprep.subr.mxu0 0.0
      %258 = vmatpush1.xpose.msra.mxu0 0.0
      %259 = vmatprep.subr.mxu0 0.0
      %260 = vmatpush1.xpose.msra.mxu0 0.0
      %261 = vmatprep.subr.mxu0 0.0
      %262 = vmatpush1.xpose.msra.mxu0 0.0
      %263 = vmatprep.subr.mxu0 0.0
      %264 = vmatpush1.xpose.msra.mxu0 0.0
      %265 = vmatprep.subr.mxu0 0.0
      %266 = vmatpush1.xpose.msra.mxu0 0.0
      %267 = vmatprep.subr.mxu0 0.0
      %268 = vmatpush1.xpose.msra.mxu0 0.0
      %269 = vmatprep.subr.mxu0 0.0
      %270 = vmatpush1.xpose.msra.mxu0 0.0
      %271 = vmatprep.mubr.f32.mxu0 0.0
      %272 = vmatmul.mubr.f32.gmra.mrb[0].mxu0 %v190
      %v273 = vpop.f32.mrb[0].mxu0
      %v274 = vadd.f32 0.0, %v273
      %v275 = vpop.f32.mrb[0].mxu0
      %276 = vdwg.mxu0
      %v277 = vmul.f32 %v190, %v190
      %vm278 = vcmask 1040384
      %v279 = vsel %vm278, %v277, 0.0
      %280 = vadd.xlane.f32.xlu0 %v279
      %v281 = vpop.xlane.xlu0 %280
      %v282 = vmul.f32 %v191, %v191
      %v283 = vmul.f32 %v192, %v192
      %v284 = vmul.f32 %v193, %v193
      %v285 = vmul.f32 %v194, %v194
      %v286 = vmul.f32 %v195, %v195
      %v287 = vmul.f32 %v196, %v196
      %v288 = vmul.f32 %v197, %v197
      %v289 = vmul.f32 %v198, %v198
      %v290 = vmul.f32 %v199, %v199
      %v291 = vmul.f32 %v200, %v200
      %v292 = vmul.f32 %v201, %v201
      %v293 = vmul.f32 %v202, %v202
      %v294 = vmul.f32 %v203, %v203
      %v295 = vmul.f32 %v204, %v204
      %v296 = vmul.f32 %v205, %v205
      %v297 = vmul.f32 %v206, %v206
      %298 = vadd.xlane.f32.xlu0 %v282
      %v299 = vpop.xlane.xlu0 %298
      %300 = vadd.xlane.f32.xlu0 %v283
      %v301 = vpop.xlane.xlu0 %300
      %302 = vadd.xlane.f32.xlu0 %v284
      %v303 = vpop.xlane.xlu0 %302
      %304 = vadd.xlane.f32.xlu0 %v285
      %v305 = vpop.xlane.xlu0 %304
      %306 = vadd.xlane.f32.xlu0 %v286
      %v307 = vpop.xlane.xlu0 %306
      %308 = vadd.xlane.f32.xlu0 %v287
      %v309 = vpop.xlane.xlu0 %308
      %310 = vadd.xlane.f32.xlu0 %v288
      %v311 = vpop.xlane.xlu0 %310
      %312 = vadd.xlane.f32.xlu0 %v289
      %v313 = vpop.xlane.xlu0 %312
      %314 = vadd.xlane.f32.xlu0 %v290
      %v315 = vpop.xlane.xlu0 %314
      %316 = vadd.xlane.f32.xlu0 %v291
      %v317 = vpop.xlane.xlu0 %316
      %318 = vadd.xlane.f32.xlu0 %v292
      %v319 = vpop.xlane.xlu0 %318
      %320 = vadd.xlane.f32.xlu0 %v293
      %v321 = vpop.xlane.xlu0 %320
      %322 = vadd.xlane.f32.xlu0 %v294
      %v323 = vpop.xlane.xlu0 %322
      %324 = vadd.xlane.f32.xlu0 %v295
      %v325 = vpop.xlane.xlu0 %324
      %326 = vadd.xlane.f32.xlu0 %v296
      %v327 = vpop.xlane.xlu0 %326
      %328 = vadd.xlane.f32.xlu0 %v297
      %v329 = vpop.xlane.xlu0 %328
      %v330 = vmul.f32 %v274, 2.0
      %v331 = vsub.f32 %v330, %v281
      %v348 = vlaneseq
      %v349 = vand.u32 %v348, 127
      %v350 = vlaneseq
      %v351 = vshrl.u32 %v350, 7
      %v352 = vsub.s32 %v349, %v351
      %v353 = vrot.slane %v299, %v352
      %v354 = vadd.s32 %v349, 4294967288
      %v355 = vlaneseq
      %v356 = vshrl.u32 %v355, 7
      %v357 = vsub.s32 %v354, %v356
      %v358 = vrot.slane %v301, %v357
      %vm359 = vcmask 130112
      %v360 = vsel %vm359, %v358, %v353
      %v361 = vadd.s32 %v349, 4294967280
      %v362 = vlaneseq
      %v363 = vshrl.u32 %v362, 7
      %v364 = vsub.s32 %v361, %v363
      %v365 = vrot.slane %v303, %v364
      %vm366 = vcmask 195712
      %v367 = vsel %vm366, %v365, %v360
      %v368 = vadd.s32 %v349, 4294967272
      %v369 = vlaneseq
      %v370 = vshrl.u32 %v369, 7
      %v371 = vsub.s32 %v368, %v370
      %v372 = vrot.slane %v305, %v371
      %vm373 = vcmask 261312
      %v374 = vsel %vm373, %v372, %v367
      %v375 = vadd.s32 %v349, 4294967264
      %v376 = vlaneseq
      %v377 = vshrl.u32 %v376, 7
      %v378 = vsub.s32 %v375, %v377
      %v379 = vrot.slane %v307, %v378
      %vm380 = vcmask 326912
      %v381 = vsel %vm380, %v379, %v374
      %v382 = vadd.s32 %v349, 4294967256
      %v383 = vlaneseq
      %v384 = vshrl.u32 %v383, 7
      %v385 = vsub.s32 %v382, %v384
      %v386 = vrot.slane %v309, %v385
      %vm387 = vcmask 392512
      %v388 = vsel %vm387, %v386, %v381
      %v389 = vadd.s32 %v349, 4294967248
      %v390 = vlaneseq
      %v391 = vshrl.u32 %v390, 7
      %v392 = vsub.s32 %v389, %v391
      %v393 = vrot.slane %v311, %v392
      %vm394 = vcmask 458112
      %v395 = vsel %vm394, %v393, %v388
      %v396 = vadd.s32 %v349, 4294967240
      %v397 = vlaneseq
      %v398 = vshrl.u32 %v397, 7
      %v399 = vsub.s32 %v396, %v398
      %v400 = vrot.slane %v313, %v399
      %vm401 = vcmask 523712
      %v402 = vsel %vm401, %v400, %v395
      %v403 = vadd.s32 %v349, 4294967232
      %v404 = vlaneseq
      %v405 = vshrl.u32 %v404, 7
      %v406 = vsub.s32 %v403, %v405
      %v407 = vrot.slane %v315, %v406
      %vm408 = vcmask 589312
      %v409 = vsel %vm408, %v407, %v402
      %v410 = vadd.s32 %v349, 4294967224
      %v411 = vlaneseq
      %v412 = vshrl.u32 %v411, 7
      %v413 = vsub.s32 %v410, %v412
      %v414 = vrot.slane %v317, %v413
      %vm415 = vcmask 654912
      %v416 = vsel %vm415, %v414, %v409
      %v417 = vadd.s32 %v349, 4294967216
      %v418 = vlaneseq
      %v419 = vshrl.u32 %v418, 7
      %v420 = vsub.s32 %v417, %v419
      %v421 = vrot.slane %v319, %v420
      %vm422 = vcmask 720512
      %v423 = vsel %vm422, %v421, %v416
      %v424 = vadd.s32 %v349, 4294967208
      %v425 = vlaneseq
      %v426 = vshrl.u32 %v425, 7
      %v427 = vsub.s32 %v424, %v426
      %v428 = vrot.slane %v321, %v427
      %vm429 = vcmask 786112
      %v430 = vsel %vm429, %v428, %v423
      %v431 = vadd.s32 %v349, 4294967200
      %v432 = vlaneseq
      %v433 = vshrl.u32 %v432, 7
      %v434 = vsub.s32 %v431, %v433
      %v435 = vrot.slane %v323, %v434
      %vm436 = vcmask 851712
      %v437 = vsel %vm436, %v435, %v430
      %v438 = vadd.s32 %v349, 4294967192
      %v439 = vlaneseq
      %v440 = vshrl.u32 %v439, 7
      %v441 = vsub.s32 %v438, %v440
      %v442 = vrot.slane %v325, %v441
      %vm443 = vcmask 917312
      %v444 = vsel %vm443, %v442, %v437
      %v445 = vadd.s32 %v349, 4294967184
      %v446 = vlaneseq
      %v447 = vshrl.u32 %v446, 7
      %v448 = vsub.s32 %v445, %v447
      %v449 = vrot.slane %v327, %v448
      %vm450 = vcmask 982912
      %v451 = vsel %vm450, %v449, %v444
      %v452 = vadd.s32 %v349, 4294967176
      %v453 = vlaneseq
      %v454 = vshrl.u32 %v453, 7
      %v455 = vsub.s32 %v452, %v454
      %v456 = vrot.slane %v329, %v455
      %vm457 = vcmask 1048512
      %v458 = vsel %vm457, %v456, %v451
      %v460 = vsub.f32 %v331, %v458
      %461 = vst [vmem:[%s189] sm:$0x1] %v460
      %p462 = scmp.lt.s32.totalorder %s17, 7
      %s463 = scalar_select %p462, %s17, 7
      %p464 = scmp.lt.s32.totalorder %s18, 0
      %s465 = scalar_select %p464, %s18, 0
      %s466 = sadd.s32 %s465, %s463
      %s467 = scalar_lea.vmem %s2, %s466
      // Predicated region
      $region29: #{_lambda_.3} parent=27 // pred_check
        %p468 = pneg %p99
      $region30: #{_lambda_.3} parent=27 // pred_check_branch
        %470 = sbr.rel (%p468) target = $region32
      $region31: #{_lambda_.3} parent=27 // pred_region
        _
      $region32: #{_lambda_.3} parent=27 // pred_fallthru
        _
    $region28: #{_lambda_.3} parent=5 // pred_fallthru
      _
    %p471 = scmp.le.s32.totalorder 2, %s8
    // Predicated region
    $region33: #{_lambda_.3} parent=5 // pred_check
      %p472 = pneg %p471
    $region34: #{_lambda_.3} parent=5 // pred_check_branch
      %474 = sbr.rel (%p472) target = $region36
    $region35: #{_lambda_.3} parent=5 // pred_region
      %s475 = ssub.s32 %s8, 2
      // Predicated region
      $region37: #{_lambda_.3} parent=35 // pred_check
        %p476 = pneg %p105
      $region38: #{_lambda_.3} parent=35 // pred_check_branch
        %478 = sbr.rel (%p476) target = $region40
      $region39: #{_lambda_.3} parent=35 // pred_region
        %p479 = scmp.lt.s32.totalorder %s19, 7
        %s480 = scalar_select %p479, %s19, 7
        %p481 = scmp.lt.s32.totalorder %s20, 0
        %s482 = scalar_select %p481, %s20, 0
        %s483 = sadd.s32 %s482, %s480
        %s484 = scalar_lea.vmem %s2, %s483
      $region40: #{_lambda_.3} parent=35 // pred_fallthru
        _
    $region36: #{_lambda_.3} parent=5 // pred_fallthru
      _
  $region6: #{_lambda_.3} parent=0 // loop_footer
    %s12 = sadd.s32 1, %s8
  $region7: #{_lambda_.3} parent=0 // loop_footer_branch
    %7 = sbr.rel target = $region3
  $region8: #{_lambda_.3} parent=0 // loop_exit
    _

</llo_original>
